<compile_context>
chip_gen: v6e
topology: v6e:2x2x1
jax: 0.10.0
libtpu: 0.0.40
codegen_flags: <defaults>
</compile_context>

<pallas_src>
import jax
import jax.numpy as jnp
from jax.experimental import pallas as pl
from jax.experimental.pallas import tpu as pltpu


# params layout (flat f32[17] in SMEM):
#   [0:4]   w1[0, :]  (input feature 0 -> hidden j)
#   [4:8]   w1[1, :]  (input feature 1 -> hidden j)
#   [8:12]  b1[:]
#   [12:16] w2[:, 0]
#   [16]    b2[0]
def xor_mlp_kernel(p_ref, x_ref, o_ref):
    x0 = x_ref[0:1, :]                       # (1, TB)  f32, lane-dense
    x1 = x_ref[1:2, :]                       # (1, TB)

    # Layer 2 accumulator starts at b2 (scalar splat from SMEM).
    y = jnp.zeros_like(x0) + p_ref[16]       # (1, TB)

    # Layer 1 as 4 broadcast FMAs + ReLU, fused into the layer-2 reduction.
    for j in range(4):                       # static unroll: pure VPU ops
        h_j = x0 * p_ref[j] + x1 * p_ref[4 + j] + p_ref[8 + j]
        h_j = jnp.maximum(h_j, 0.0)          # ReLU
        y = y + h_j * p_ref[12 + j]

    # Sigmoid on the EUP; separate VLIW slot, effectively free here.
    o_ref[...] = jax.nn.sigmoid(y).astype(o_ref.dtype)


def xor_model_forward(x, w1, b1, w2, b2, *, tb=512):
    """x: (B, 2) f32, w1: (2,4), b1: (4,), w2: (4,1), b2: (1,). Returns (B, 1) f32.

    tb: batch tile (lanes per grid step); must be a multiple of 128. Sized small
    enough that (in + out) * 2 double-buffers stays far below scoped VMEM even
    on v7x (64 MiB physical / 32 MiB default scoped).
    """
    B = x.shape[0]
    bp = ((B + tb - 1) // tb) * tb           # pad batch up to a tile multiple

    # Lane-major layout: (2, Bp); zero-pad the ragged tail (discarded later).
    x_t = jnp.zeros((2, bp), jnp.float32).at[:, :B].set(x.astype(jnp.float32).T)

    # Flatten all 17 parameters into one 1-D SMEM array (avoids 2-D SMEM padding).
    params = jnp.concatenate([
        w1[0, :].astype(jnp.float32),        # (4,)
        w1[1, :].astype(jnp.float32),        # (4,)
        b1.reshape(-1).astype(jnp.float32),  # (4,)
        w2.reshape(-1).astype(jnp.float32),  # (4,)
        b2.reshape(-1).astype(jnp.float32),  # (1,)
    ])                                       # (17,)

    out_t = pl.pallas_call(
        xor_mlp_kernel,
        out_shape=jax.ShapeDtypeStruct((1, bp), jnp.float32),
        grid=(bp // tb,),
        in_specs=[
            pl.BlockSpec(memory_space=pltpu.MemorySpace.SMEM),   # params, resident
            pl.BlockSpec((2, tb), lambda i: (0, i)),             # x tile (2, TB)
        ],
        out_specs=pl.BlockSpec((1, tb), lambda i: (0, i)),       # out tile (1, TB)
        compiler_params=pltpu.CompilerParams(
            dimension_semantics=("parallel",),                   # shard batch on v7x megacore
        ),
    )(params, x_t)

    # Back to the PyTorch-equivalent (B, 1) interface; drop padded lanes.
    return out_t[0, :B].reshape(B, 1)


def init_params(key):
    """Deterministic init mimicking PyTorch nn.Linear default U(-1/sqrt(fan_in), +1/sqrt(fan_in))."""
    k1, k2, k3, k4 = jax.random.split(key, 4)
    lim1 = 1.0 / jnp.sqrt(2.0)   # fan_in = 2
    lim2 = 1.0 / jnp.sqrt(4.0)   # fan_in = 4
    w1 = jax.random.uniform(k1, (2, 4), jnp.float32, -lim1, lim1)   # stored (in, out)
    b1 = jax.random.uniform(k2, (4,), jnp.float32, -lim1, lim1)
    w2 = jax.random.uniform(k3, (4, 1), jnp.float32, -lim2, lim2)
    b2 = jax.random.uniform(k4, (1,), jnp.float32, -lim2, lim2)
    return w1, b1, w2, b2


def reference_forward(x, w1, b1, w2, b2):
    h = jnp.maximum(x @ w1 + b1, 0.0)
    return jax.nn.sigmoid(h @ w2 + b2)


if __name__ == "__main__":
    key = jax.random.PRNGKey(0)
    pkey, xkey = jax.random.split(key)
    w1, b1, w2, b2 = init_params(pkey)

    # XOR truth table plus a few random rows: batch=8, features=2.
    xor_table = jnp.array([[0., 0.], [0., 1.], [1., 0.], [1., 1.]], jnp.float32)
    rand_rows = jax.random.uniform(xkey, (4, 2), jnp.float32)
    x = jnp.concatenate([xor_table, rand_rows], axis=0)   # (8, 2)

    out = xor_model_forward(x, w1, b1, w2, b2)
    out = jax.block_until_ready(out)

    ref = reference_forward(x, w1, b1, w2, b2)
    assert out.shape == (8, 1), out.shape
    assert jnp.allclose(out, ref, atol=1e-5, rtol=1e-5), (out, ref)
    print("KERNEL_OK")
</pallas_src>

<mosaic_0001>
module attributes {stable_mosaic.version = 11 : i64} {
  func.func @xor_mlp_kernel(%arg0: i32, %arg1: memref<17xf32, #tpu.memory_space<smem>>, %arg2: memref<2x512xf32, #tpu.memory_space<vmem>>, %arg3: memref<1x512xf32, #tpu.memory_space<vmem>>) attributes {dimension_semantics = [#tpu.dimension_semantics<parallel>], iteration_bounds = array<i64: 1>, scalar_prefetch = 0 : i64, scratch_operands = 0 : i64, tpu.core_type = #tpu.core_type<tc>, window_params = [{transform_indices = @transform_0, window_bounds = array<i64: 17>}, {transform_indices = @transform_1, window_bounds = array<i64: 2, 512>}, {transform_indices = @transform_2, window_bounds = array<i64: 1, 512>}]} {
    %c0 = arith.constant 0 : index
    %c0_0 = arith.constant 0 : index
    %0 = vector.load %arg2[%c0, %c0_0] : memref<2x512xf32, #tpu.memory_space<vmem>>, vector<1x512xf32>
    %c1 = arith.constant 1 : index
    %c0_1 = arith.constant 0 : index
    %1 = vector.load %arg2[%c1, %c0_1] : memref<2x512xf32, #tpu.memory_space<vmem>>, vector<1x512xf32>
    %cst = arith.constant 0.000000e+00 : f32
    %2 = vector.broadcast %cst : f32 to vector<1x512xf32>
    %c16 = arith.constant 16 : index
    %3 = memref.load %arg1[%c16] : memref<17xf32, #tpu.memory_space<smem>>
    %4 = vector.broadcast %3 : f32 to vector<1x512xf32>
    %5 = arith.addf %2, %4 : vector<1x512xf32>
    %c0_2 = arith.constant 0 : index
    %6 = memref.load %arg1[%c0_2] : memref<17xf32, #tpu.memory_space<smem>>
    %7 = vector.broadcast %6 : f32 to vector<1x512xf32>
    %8 = arith.mulf %0, %7 : vector<1x512xf32>
    %c4 = arith.constant 4 : index
    %9 = memref.load %arg1[%c4] : memref<17xf32, #tpu.memory_space<smem>>
    %10 = vector.broadcast %9 : f32 to vector<1x512xf32>
    %11 = arith.mulf %1, %10 : vector<1x512xf32>
    %12 = arith.addf %8, %11 : vector<1x512xf32>
    %c8 = arith.constant 8 : index
    %13 = memref.load %arg1[%c8] : memref<17xf32, #tpu.memory_space<smem>>
    %14 = vector.broadcast %13 : f32 to vector<1x512xf32>
    %15 = arith.addf %12, %14 : vector<1x512xf32>
    %cst_3 = arith.constant 0.000000e+00 : f32
    %16 = vector.broadcast %cst_3 : f32 to vector<1x512xf32>
    %17 = arith.maximumf %15, %16 : vector<1x512xf32>
    %c12 = arith.constant 12 : index
    %18 = memref.load %arg1[%c12] : memref<17xf32, #tpu.memory_space<smem>>
    %19 = vector.broadcast %18 : f32 to vector<1x512xf32>
    %20 = arith.mulf %17, %19 : vector<1x512xf32>
    %21 = arith.addf %5, %20 : vector<1x512xf32>
    %c1_4 = arith.constant 1 : index
    %22 = memref.load %arg1[%c1_4] : memref<17xf32, #tpu.memory_space<smem>>
    %23 = vector.broadcast %22 : f32 to vector<1x512xf32>
    %24 = arith.mulf %0, %23 : vector<1x512xf32>
    %c5 = arith.constant 5 : index
    %25 = memref.load %arg1[%c5] : memref<17xf32, #tpu.memory_space<smem>>
    %26 = vector.broadcast %25 : f32 to vector<1x512xf32>
    %27 = arith.mulf %1, %26 : vector<1x512xf32>
    %28 = arith.addf %24, %27 : vector<1x512xf32>
    %c9 = arith.constant 9 : index
    %29 = memref.load %arg1[%c9] : memref<17xf32, #tpu.memory_space<smem>>
    %30 = vector.broadcast %29 : f32 to vector<1x512xf32>
    %31 = arith.addf %28, %30 : vector<1x512xf32>
    %cst_5 = arith.constant 0.000000e+00 : f32
    %32 = vector.broadcast %cst_5 : f32 to vector<1x512xf32>
    %33 = arith.maximumf %31, %32 : vector<1x512xf32>
    %c13 = arith.constant 13 : index
    %34 = memref.load %arg1[%c13] : memref<17xf32, #tpu.memory_space<smem>>
    %35 = vector.broadcast %34 : f32 to vector<1x512xf32>
    %36 = arith.mulf %33, %35 : vector<1x512xf32>
    %37 = arith.addf %21, %36 : vector<1x512xf32>
    %c2 = arith.constant 2 : index
    %38 = memref.load %arg1[%c2] : memref<17xf32, #tpu.memory_space<smem>>
    %39 = vector.broadcast %38 : f32 to vector<1x512xf32>
    %40 = arith.mulf %0, %39 : vector<1x512xf32>
    %c6 = arith.constant 6 : index
    %41 = memref.load %arg1[%c6] : memref<17xf32, #tpu.memory_space<smem>>
    %42 = vector.broadcast %41 : f32 to vector<1x512xf32>
    %43 = arith.mulf %1, %42 : vector<1x512xf32>
    %44 = arith.addf %40, %43 : vector<1x512xf32>
    %c10 = arith.constant 10 : index
    %45 = memref.load %arg1[%c10] : memref<17xf32, #tpu.memory_space<smem>>
    %46 = vector.broadcast %45 : f32 to vector<1x512xf32>
    %47 = arith.addf %44, %46 : vector<1x512xf32>
    %cst_6 = arith.constant 0.000000e+00 : f32
    %48 = vector.broadcast %cst_6 : f32 to vector<1x512xf32>
    %49 = arith.maximumf %47, %48 : vector<1x512xf32>
    %c14 = arith.constant 14 : index
    %50 = memref.load %arg1[%c14] : memref<17xf32, #tpu.memory_space<smem>>
    %51 = vector.broadcast %50 : f32 to vector<1x512xf32>
    %52 = arith.mulf %49, %51 : vector<1x512xf32>
    %53 = arith.addf %37, %52 : vector<1x512xf32>
    %c3 = arith.constant 3 : index
    %54 = memref.load %arg1[%c3] : memref<17xf32, #tpu.memory_space<smem>>
    %55 = vector.broadcast %54 : f32 to vector<1x512xf32>
    %56 = arith.mulf %0, %55 : vector<1x512xf32>
    %c7 = arith.constant 7 : index
    %57 = memref.load %arg1[%c7] : memref<17xf32, #tpu.memory_space<smem>>
    %58 = vector.broadcast %57 : f32 to vector<1x512xf32>
    %59 = arith.mulf %1, %58 : vector<1x512xf32>
    %60 = arith.addf %56, %59 : vector<1x512xf32>
    %c11 = arith.constant 11 : index
    %61 = memref.load %arg1[%c11] : memref<17xf32, #tpu.memory_space<smem>>
    %62 = vector.broadcast %61 : f32 to vector<1x512xf32>
    %63 = arith.addf %60, %62 : vector<1x512xf32>
    %cst_7 = arith.constant 0.000000e+00 : f32
    %64 = vector.broadcast %cst_7 : f32 to vector<1x512xf32>
    %65 = arith.maximumf %63, %64 : vector<1x512xf32>
    %c15 = arith.constant 15 : index
    %66 = memref.load %arg1[%c15] : memref<17xf32, #tpu.memory_space<smem>>
    %67 = vector.broadcast %66 : f32 to vector<1x512xf32>
    %68 = arith.mulf %65, %67 : vector<1x512xf32>
    %69 = arith.addf %53, %68 : vector<1x512xf32>
    %70 = arith.negf %69 : vector<1x512xf32>
    %71 = math.exp %70 : vector<1x512xf32>
    %cst_8 = arith.constant 1.000000e+00 : f32
    %72 = vector.broadcast %cst_8 : f32 to vector<1x512xf32>
    %73 = arith.addf %72, %71 : vector<1x512xf32>
    %74 = arith.divf %72, %73 : vector<1x512xf32>
    %c0_9 = arith.constant 0 : index
    %c0_10 = arith.constant 0 : index
    %75 = vector.load %arg3[%c0_9, %c0_10] : memref<1x512xf32, #tpu.memory_space<vmem>>, vector<1x512xf32>
    tpu.vector_store %arg3[%c0_9, %c0_10], %74 {strides = array<i32>} : memref<1x512xf32, #tpu.memory_space<vmem>>, vector<1x512xf32>,
    return
  }
  func.func @transform_0(%arg0: i32) -> i32 {
    %c0_i32 = arith.constant 0 : i32
    %c0_i32_0 = arith.constant 0 : i32
    return %c0_i32 : i32
  }
  func.func @transform_1(%arg0: i32) -> (i32, i32) {
    %c0_i32 = arith.constant 0 : i32
    %c0_i32_0 = arith.constant 0 : i32
    return %c0_i32, %arg0 : i32, i32
  }
  func.func @transform_2(%arg0: i32) -> (i32, i32) {
    %c0_i32 = arith.constant 0 : i32
    %c0_i32_0 = arith.constant 0 : i32
    return %c0_i32, %arg0 : i32, i32
  }
}

</mosaic_0001>

<llo_original>
// kernel: tpu_custom_call.1
$region0: #{tpu_custom_call.1}
  #allocation0 [shape = 'u32[]', space=smem, size = 0x4, offset = 0x4, fixed_abs, tag = 'smem constant byte address 0x4 - core index']
  #allocation1 [shape = 'u32[144,128]{1,0:T(1,128)}', space=vmem, size = 0x12000, scoped, tag = 'internal scratch']
  %s0 = inlined_call_operand.hbm [shape: f32[17], index: 0, kind: input, shape index: {}]
  %s1 = inlined_call_operand.hbm [shape: f32[2,512], index: 1, kind: input, shape index: {}]
  %s2 = inlined_call_operand.hbm [shape: f32[1,512], index: 2, kind: output, shape index: {}]
  %s3 = sld [smem:[#allocation0]]
  $region26: #{tpu_custom_call.1} parent=0
    _
  %s5 = ssub.s32 1, %s3
  %s6 = scalar_select 0, %s5, %s3
  $region1: #{tpu_custom_call.1} parent=0
    #allocation2 [shape = 'u8[512]{0}', space=smem, size = 0x200, scoped, tag = 'input window, operand 0, single buffered']
    #allocation3 [shape = 's32[1]{0}', space=sflag, size = 0x4, scoped, tag = 'scoped memory for tpu_custom_call.1']
    #allocation4 [shape = 's32[1]{0}', space=sflag, size = 0x4, scoped, tag = 'scoped memory for tpu_custom_call.1']
    #allocation5 [shape = 's32[1]{0}', space=sflag, size = 0x4, scoped, tag = 'scoped memory for tpu_custom_call.1']
    #allocation6 [shape = 'u8[4096]{0}', space=vmem, size = 0x1000, scoped, tag = 'input window, operand 1, single buffered']
    #allocation7 [shape = 'u8[2048]{0}', space=vmem, size = 0x800, scoped, tag = 'output window, operand 0, single buffered']
    %7 = vsyncpa [#allocation5], 0
    %8 = vsyncpa [#allocation3], 0
    %9 = vsyncpa [#allocation4], 0
    // Predicated region
    $region2: #{tpu_custom_call.1} parent=1 // pred_check
      _
    $region3: #{tpu_custom_call.1} parent=1 // pred_check_branch
      %11 = sbr.rel (0) target = $region5
    $region4: #{tpu_custom_call.1} parent=1 // pred_region
      %s13 = ssub.s32 16, 16
      %14 = vsyncadd [#allocation5], %s13
      %17 = dma.hbm_to_smem %s0, 16, [#allocation2], [#allocation5]
    $region5: #{tpu_custom_call.1} parent=1 // pred_fallthru
      _
    // Predicated region
    $region6: #{tpu_custom_call.1} parent=1 // pred_check
      _
    $region7: #{tpu_custom_call.1} parent=1 // pred_check_branch
      %19 = sbr.rel (0) target = $region9
    $region8: #{tpu_custom_call.1} parent=1 // pred_region
      %s21 = ssub.s32 128, 128
      %22 = vsyncadd [#allocation3], %s21
      %s24 = sshll.u32 [#allocation6], 4
      %s25 = int_to_ptr.vmem [resolvable:$true] %s24
      %27 = dma.hbm_to_vmem [thread:$0]  %s1, 128, %s25, [#allocation3]
    $region9: #{tpu_custom_call.1} parent=1 // pred_fallthru
      _
    // Predicated region
    $region10: #{tpu_custom_call.1} parent=1 // pred_check
      _
    $region11: #{tpu_custom_call.1} parent=1 // pred_check_branch
      %29 = sbr.rel (0) target = $region13
    $region12: #{tpu_custom_call.1} parent=1 // pred_region
      %30 = dma.done [#allocation5], 16
    $region13: #{tpu_custom_call.1} parent=1 // pred_fallthru
      _
    // Predicated region
    $region14: #{tpu_custom_call.1} parent=1 // pred_check
      _
    $region15: #{tpu_custom_call.1} parent=1 // pred_check_branch
      %32 = sbr.rel (0) target = $region17
    $region16: #{tpu_custom_call.1} parent=1 // pred_region
      %33 = dma.done [#allocation3], 128
    $region17: #{tpu_custom_call.1} parent=1 // pred_fallthru
      _
    %34 = sfence
    %v35 = vld [vmem:[#allocation6] ss:$2 sm:$0xf]
    %s36 = scalar_lea.vmem [#allocation6], 1
    %v37 = vld [vmem:[%s36] ss:$2 sm:$0xf]
    %s38 = sld [smem:[#allocation2 + $0x10]]
    %v39 = vstv %s38
    %v40 = vadd.f32 %v39, 0.0
    %s41 = sld [smem:[#allocation2]]
    %v42 = vstv %s41
    %v43 = vmul.f32 %v35, %v42
    %s44 = sld [smem:[#allocation2 + $0x4]]
    %v45 = vstv %s44
    %v46 = vmul.f32 %v37, %v45
    %v47 = vadd.f32 %v43, %v46
    %s48 = sld [smem:[#allocation2 + $0x8]]
    %v49 = vstv %s48
    %v50 = vadd.f32 %v47, %v49
    %v51 = vmax.f32 %v50, 0.0
    %s52 = sld [smem:[#allocation2 + $0xc]]
    %v53 = vstv %s52
    %v54 = vmul.f32 %v51, %v53
    %v55 = vadd.f32 %v40, %v54
    %s56 = sld [smem:[#allocation2 + $0x1]]
    %v57 = vstv %s56
    %v58 = vmul.f32 %v35, %v57
    %s59 = sld [smem:[#allocation2 + $0x5]]
    %v60 = vstv %s59
    %v61 = vmul.f32 %v37, %v60
    %v62 = vadd.f32 %v58, %v61
    %s63 = sld [smem:[#allocation2 + $0x9]]
    %v64 = vstv %s63
    %v65 = vadd.f32 %v62, %v64
    %v66 = vmax.f32 %v65, 0.0
    %s67 = sld [smem:[#allocation2 + $0xd]]
    %v68 = vstv %s67
    %v69 = vmul.f32 %v66, %v68
    %v70 = vadd.f32 %v55, %v69
    %s71 = sld [smem:[#allocation2 + $0x2]]
    %v72 = vstv %s71
    %v73 = vmul.f32 %v35, %v72
    %s74 = sld [smem:[#allocation2 + $0x6]]
    %v75 = vstv %s74
    %v76 = vmul.f32 %v37, %v75
    %v77 = vadd.f32 %v73, %v76
    %s78 = sld [smem:[#allocation2 + $0xa]]
    %v79 = vstv %s78
    %v80 = vadd.f32 %v77, %v79
    %v81 = vmax.f32 %v80, 0.0
    %s82 = sld [smem:[#allocation2 + $0xe]]
    %v83 = vstv %s82
    %v84 = vmul.f32 %v81, %v83
    %v85 = vadd.f32 %v70, %v84
    %s86 = sld [smem:[#allocation2 + $0x3]]
    %v87 = vstv %s86
    %v88 = vmul.f32 %v35, %v87
    %s89 = sld [smem:[#allocation2 + $0x7]]
    %v90 = vstv %s89
    %v91 = vmul.f32 %v37, %v90
    %v92 = vadd.f32 %v88, %v91
    %s93 = sld [smem:[#allocation2 + $0xb]]
    %v94 = vstv %s93
    %v95 = vadd.f32 %v92, %v94
    %v96 = vmax.f32 %v95, 0.0
    %s97 = sld [smem:[#allocation2 + $0xf]]
    %v98 = vstv %s97
    %v99 = vmul.f32 %v96, %v98
    %v100 = vadd.f32 %v85, %v99
    %v101 = vxor.u32 %v100, 2147483648
    %v102 = vmul.f32 %v101, 1.442695
    %v103 = vpow.pop %v102
    %v104 = vadd.f32 %v103, 1.0
    %v105 = vrcp.pop %v104
    %v106 = vmul.f32 1.0, %v105
    %v107 = vlaneseq
    %vm108 = vcmp.ge.s32.totalorder %v107, 0
    %vm109 = vcmp.lt.s32.totalorder %v107, 512
    %vm110 = vmand %vm108, %vm109
    %111 = vst.msk [vmem:[#allocation7] sm:$0xf] %vm110, %v106
    // Predicated region
    $region18: #{tpu_custom_call.1} parent=1 // pred_check
      _
    $region19: #{tpu_custom_call.1} parent=1 // pred_check_branch
      %113 = sbr.rel (0) target = $region21
    $region20: #{tpu_custom_call.1} parent=1 // pred_region
      %s115 = ssub.s32 64, 64
      %116 = vsyncadd [#allocation4], %s115
      %s118 = sshll.u32 [#allocation7], 4
      %s119 = int_to_ptr.vmem [resolvable:$true] %s118
      %121 = dma.vmem_to_hbm [thread:$0]  %s119, 64, %s2, [#allocation4]
    $region21: #{tpu_custom_call.1} parent=1 // pred_fallthru
      _
    // Predicated region
    $region22: #{tpu_custom_call.1} parent=1 // pred_check
      _
    $region23: #{tpu_custom_call.1} parent=1 // pred_check_branch
      %123 = sbr.rel (0) target = $region25
    $region24: #{tpu_custom_call.1} parent=1 // pred_region
      %124 = dma.done [#allocation4], 64
    $region25: #{tpu_custom_call.1} parent=1 // pred_fallthru
      _
    %125 = vsyncpa [#allocation3], 1
    %126 = vsyncpa [#allocation4], 1
    %127 = vsyncpa [#allocation5], 1

</llo_original>
